<compile_context>
chip_gen: v5e
topology: v5e:2x2
jax: 0.10.0
libtpu: 0.0.40
codegen_flags: <defaults>
</compile_context>

<pallas_src>
import jax
import jax.numpy as jnp
import numpy as np
from jax.experimental import pallas as pl
from jax.experimental.pallas import tpu as pltpu


def _round_up(x, m):
    return ((x + m - 1) // m) * m


# ----------------------------- Pallas kernel -------------------------------
def _patch_embed_kernel(xlo_ref, xnx_ref, w_ref, b_ref, o_ref):
    # xlo_ref: (1, TM, CS)  chunks [i*TM, i*TM+TM)            (compute dtype)
    # xnx_ref: (1, 8,  CS)  chunks [(i+1)*TM, (i+1)*TM+8)     (lookahead)
    # w_ref  : (2, CS, E)   [W_lo, W_hi]                      (compute dtype)
    # b_ref  : (1, E)       bias                              (float32)
    # o_ref  : (1, TM, E)
    tm = xlo_ref.shape[1]
    xlo = xlo_ref[0]                                       # (TM, CS)

    # Build the "+1 chunk" operand: row r must hold chunk (tile_start + r + 1),
    # i.e. xlo shifted up by one row with the last row taken from the
    # lookahead block.  Do the sublane shuffle in f32 (block is tiny, casts
    # are negligible; avoids packed-bf16 sublane-rotate corner cases).
    xlo_f = xlo.astype(jnp.float32)
    rolled = pltpu.roll(xlo_f, shift=tm - 1, axis=0)       # rolled[r] = xlo[(r+1) % TM]
    row_ids = jax.lax.broadcasted_iota(jnp.int32, rolled.shape, 0)
    nxt_row = jnp.broadcast_to(xnx_ref[0][0:1, :].astype(jnp.float32), rolled.shape)
    xhi = jnp.where(row_ids == tm - 1, nxt_row, rolled).astype(xlo.dtype)

    # MXU matmuls with f32 accumulation; f32 bias epilogue.
    acc = jnp.dot(xlo, w_ref[0], preferred_element_type=jnp.float32)
    acc = acc + jnp.dot(xhi, w_ref[1], preferred_element_type=jnp.float32)
    o_ref[0] = (acc + b_ref[...]).astype(o_ref.dtype)


# ----------------------------- PatchEmbed wrapper ---------------------------
class PatchEmbedPallas:
    """Pallas-TPU equivalent of the PyTorch PatchEmbed module."""

    def __init__(self, patch_size=8, in_chans=3, embed_dim=384, key=None,
                 compute_dtype=jnp.bfloat16, out_dtype=jnp.float32, tile_m=512):
        assert patch_size % 2 == 0, "patch_size must be even (stride = patch_size // 2)"
        self.patch_size = patch_size
        self.stride = patch_size // 2
        self.padding = self.stride // 2
        self.in_chans = in_chans
        self.embed_dim = embed_dim
        self.compute_dtype = compute_dtype
        self.out_dtype = out_dtype
        self.tile_m = tile_m

        if key is None:
            key = jax.random.PRNGKey(0)
        kw, kb = jax.random.split(key)
        fan_in = in_chans * patch_size
        bound = 1.0 / np.sqrt(fan_in)
        # weight layout matches PyTorch Conv1d: (embed_dim, in_chans, kernel)
        self.weight = jax.random.uniform(
            kw, (embed_dim, in_chans, patch_size), dtype=jnp.float32,
            minval=-bound, maxval=bound)
        self.bias = jax.random.uniform(
            kb, (embed_dim,), dtype=jnp.float32, minval=-bound, maxval=bound)

    def __call__(self, x):
        # x: (B, C, L)  [NCL, same as PyTorch]
        B, C, L = x.shape
        K, S, P, E = self.patch_size, self.stride, self.padding, self.embed_dim
        CS = C * S
        L_out = (L + 2 * P - K) // S + 1
        n_chunks = L_out + 1                     # window t = chunks (t, t+1)

        # ---- chunkize (glue: pad + reshape/transpose; NO gather, NO 2x dup) ----
        xp = jnp.pad(x, ((0, 0), (0, 0), (P, P)))                 # (B, C, L+2P)
        xh = xp[:, :, :n_chunks * S].reshape(B, C, n_chunks, S)
        xh = jnp.transpose(xh, (0, 2, 1, 3)).reshape(B, n_chunks, CS)

        # ---- tiling over the output-position axis ----
        tm = min(self.tile_m, _round_up(L_out, 8))                # multiple of 8
        n_tiles = -(-L_out // tm)
        m_pad = n_tiles * tm
        # Pad the chunk axis so block i (TM rows) and the 8-row lookahead at
        # chunk (i+1)*TM are always in range; padded chunks are zeros.
        xh = jnp.pad(xh, ((0, 0), (0, m_pad + 8 - n_chunks), (0, 0)))
        xh = xh.astype(self.compute_dtype)

        # ---- weights: split the kernel window into its two stride-size halves ----
        w_lo = self.weight[:, :, :S].reshape(E, CS).T             # (CS, E)
        w_hi = self.weight[:, :, S:].reshape(E, CS).T             # (CS, E)
        w2 = jnp.stack([w_lo, w_hi], axis=0).astype(self.compute_dtype)   # (2,CS,E)
        b2 = self.bias.reshape(1, E).astype(jnp.float32)

        in_item = jnp.dtype(self.compute_dtype).itemsize
        out_item = jnp.dtype(self.out_dtype).itemsize
        cost = pl.CostEstimate(
            flops=2 * B * L_out * (C * K) * E,
            transcendentals=0,
            bytes_accessed=int(xh.size) * in_item + int(w2.size) * in_item
                           + int(b2.size) * 4 + B * m_pad * E * out_item)

        out = pl.pallas_call(
            _patch_embed_kernel,
            out_shape=jax.ShapeDtypeStruct((B, m_pad, E), self.out_dtype),
            grid=(B, n_tiles),
            in_specs=[
                # current TM chunks of this batch row
                pl.BlockSpec((1, tm, CS), lambda b, i: (b, i, 0)),
                # 8-row lookahead starting at chunk (i+1)*TM (same HBM array)
                pl.BlockSpec((1, 8, CS), lambda b, i: (b, (i + 1) * (tm // 8), 0)),
                # weights & bias: constant index_map -> resident, not re-DMA'd
                pl.BlockSpec((2, CS, E), lambda b, i: (0, 0, 0)),
                pl.BlockSpec((1, E), lambda b, i: (0, 0)),
            ],
            out_specs=pl.BlockSpec((1, tm, E), lambda b, i: (b, i, 0)),
            compiler_params=pltpu.CompilerParams(
                dimension_semantics=("parallel", "parallel")),
            cost_estimate=cost,
        )(xh, xh, w2, b2)

        return out[:, :L_out, :]                                   # (B, L_out, E)


# ----------------------------- reference (for check) ------------------------
def _reference_conv(x, weight, bias, stride, padding):
    y = jax.lax.conv_general_dilated(
        x, weight, window_strides=(stride,), padding=[(padding, padding)],
        dimension_numbers=("NCH", "OIH", "NCH"),
        precision=jax.lax.Precision.HIGHEST)
    y = y + bias[None, :, None]
    return jnp.transpose(y, (0, 2, 1))


if __name__ == "__main__":
    key = jax.random.PRNGKey(0)
    k_in, k_mod = jax.random.split(key)

    B, C, L = 2, 4, 16
    patch_size, embed_dim = 8, 32

    x = jax.random.normal(k_in, (B, C, L), dtype=jnp.float32)
    mod = PatchEmbedPallas(patch_size=patch_size, in_chans=C,
                           embed_dim=embed_dim, key=k_mod)

    out = jax.block_until_ready(mod(x))

    L_out = (L + 2 * mod.padding - patch_size) // mod.stride + 1
    assert out.shape == (B, L_out, embed_dim), out.shape

    # Reference conv fed the same bf16-rounded operands the kernel gives the
    # MXU (accumulation is f32 in both), so the tolerance can stay tight.
    xq = x.astype(mod.compute_dtype).astype(jnp.float32)
    wq = mod.weight.astype(mod.compute_dtype).astype(jnp.float32)
    ref = jax.block_until_ready(
        _reference_conv(xq, wq, mod.bias, mod.stride, mod.padding))

    np.testing.assert_allclose(np.asarray(out, dtype=np.float32),
                               np.asarray(ref), rtol=1e-4, atol=1e-4)
    print("KERNEL_OK")
</pallas_src>

<mosaic_0001>
module attributes {stable_mosaic.version = 11 : i64} {
  func.func @_patch_embed_kernel(%arg0: i32, %arg1: i32, %arg2: memref<1x8x16xbf16, #tpu.memory_space<vmem>>, %arg3: memref<1x8x16xbf16, #tpu.memory_space<vmem>>, %arg4: memref<2x16x32xbf16, #tpu.memory_space<vmem>>, %arg5: memref<1x32xf32, #tpu.memory_space<vmem>>, %arg6: memref<1x8x32xf32, #tpu.memory_space<vmem>>) attributes {dimension_semantics = [#tpu.dimension_semantics<parallel>, #tpu.dimension_semantics<parallel>], iteration_bounds = array<i64: 2, 1>, scalar_prefetch = 0 : i64, scratch_operands = 0 : i64, tpu.core_type = #tpu.core_type<tc>, window_params = [{transform_indices = @transform_0, window_bounds = array<i64: 1, 8, 16>}, {transform_indices = @transform_1, window_bounds = array<i64: 1, 8, 16>}, {pipeline_mode = #tpu.pipeline_mode<synchronous>, transform_indices = @transform_2, window_bounds = array<i64: 2, 16, 32>}, {pipeline_mode = #tpu.pipeline_mode<synchronous>, transform_indices = @transform_3, window_bounds = array<i64: 1, 32>}, {transform_indices = @transform_4, window_bounds = array<i64: 1, 8, 32>}]} {
    %c0 = arith.constant 0 : index
    %c0_0 = arith.constant 0 : index
    %c0_1 = arith.constant 0 : index
    %0 = vector.load %arg2[%c0, %c0_0, %c0_1] : memref<1x8x16xbf16, #tpu.memory_space<vmem>>, vector<1x8x16xbf16>
    %1 = vector.shape_cast %0 : vector<1x8x16xbf16> to vector<8x16xbf16>
    %2 = arith.extf %1 : vector<8x16xbf16> to vector<8x16xf32>
    %c7_i32 = arith.constant 7 : i32
    %3 = tpu.dynamic_rotate %2 by %c7_i32 dim 0 : vector<8x16xf32>, i32 -> vector<8x16xf32>
    %4 = tpu.iota {dimensions = array<i32: 0>} : vector<8x16xi32>
    %c0_2 = arith.constant 0 : index
    %c0_3 = arith.constant 0 : index
    %c0_4 = arith.constant 0 : index
    %5 = vector.load %arg3[%c0_2, %c0_3, %c0_4] : memref<1x8x16xbf16, #tpu.memory_space<vmem>>, vector<1x8x16xbf16>
    %6 = vector.shape_cast %5 : vector<1x8x16xbf16> to vector<8x16xbf16>
    %7 = vector.extract_strided_slice %6 {offsets = [0, 0], sizes = [1, 16], strides = [1, 1]} : vector<8x16xbf16> to vector<1x16xbf16>
    %8 = arith.extf %7 : vector<1x16xbf16> to vector<1x16xf32>
    %9 = vector.shape_cast %8 : vector<1x16xf32> to vector<1x16xf32>
    %10 = vector.broadcast %9 : vector<1x16xf32> to vector<8x16xf32>
    %c7_i32_5 = arith.constant 7 : i32
    %11 = vector.broadcast %c7_i32_5 : i32 to vector<8x16xi32>
    %12 = arith.cmpi eq, %4, %11 : vector<8x16xi32>
    %13 = arith.select %12, %10, %3 : vector<8x16xi1>, vector<8x16xf32>
    %14 = arith.truncf %13 : vector<8x16xf32> to vector<8x16xbf16>
    %c0_6 = arith.constant 0 : index
    %c0_7 = arith.constant 0 : index
    %c0_8 = arith.constant 0 : index
    %15 = vector.load %arg4[%c0_6, %c0_7, %c0_8] : memref<2x16x32xbf16, #tpu.memory_space<vmem>>, vector<1x16x32xbf16>
    %16 = vector.shape_cast %15 : vector<1x16x32xbf16> to vector<16x32xbf16>
    %cst = arith.constant dense<0.000000e+00> : vector<8x32xf32>
    %17 = tpu.matmul %1, %16, %cst {dimension_numbers = #tpu.dot_dimension_numbers<[1], [0], [0], [1], [0, 0, 1, 1], [], []>} : vector<8x16xbf16>, vector<16x32xbf16>, vector<8x32xf32> -> vector<8x32xf32>
    %c1 = arith.constant 1 : index
    %c0_9 = arith.constant 0 : index
    %c0_10 = arith.constant 0 : index
    %18 = vector.load %arg4[%c1, %c0_9, %c0_10] : memref<2x16x32xbf16, #tpu.memory_space<vmem>>, vector<1x16x32xbf16>
    %19 = vector.shape_cast %18 : vector<1x16x32xbf16> to vector<16x32xbf16>
    %cst_11 = arith.constant dense<0.000000e+00> : vector<8x32xf32>
    %20 = tpu.matmul %14, %19, %cst_11 {dimension_numbers = #tpu.dot_dimension_numbers<[1], [0], [0], [1], [0, 0, 1, 1], [], []>} : vector<8x16xbf16>, vector<16x32xbf16>, vector<8x32xf32> -> vector<8x32xf32>
    %21 = arith.addf %17, %20 : vector<8x32xf32>
    %c0_12 = arith.constant 0 : index
    %c0_13 = arith.constant 0 : index
    %22 = vector.load %arg5[%c0_12, %c0_13] : memref<1x32xf32, #tpu.memory_space<vmem>>, vector<1x32xf32>
    %23 = vector.broadcast %22 : vector<1x32xf32> to vector<8x32xf32>
    %24 = arith.addf %21, %23 : vector<8x32xf32>
    %c0_14 = arith.constant 0 : index
    %c0_15 = arith.constant 0 : index
    %c0_16 = arith.constant 0 : index
    %25 = vector.load %arg6[%c0_14, %c0_15, %c0_16] : memref<1x8x32xf32, #tpu.memory_space<vmem>>, vector<1x8x32xf32>
    %26 = vector.shape_cast %25 : vector<1x8x32xf32> to vector<8x32xf32>
    %27 = vector.shape_cast %24 : vector<8x32xf32> to vector<1x8x32xf32>
    tpu.vector_store %arg6[%c0_14, %c0_15, %c0_16], %27 {strides = array<i32>} : memref<1x8x32xf32, #tpu.memory_space<vmem>>, vector<1x8x32xf32>,
    return
  }
  func.func @transform_0(%arg0: i32, %arg1: i32) -> (i32, i32, i32) {
    %c0_i32 = arith.constant 0 : i32
    %c0_i32_0 = arith.constant 0 : i32
    return %arg0, %arg1, %c0_i32 : i32, i32, i32
  }
  func.func @transform_1(%arg0: i32, %arg1: i32) -> (i32, i32, i32) {
    %c1_i32 = arith.constant 1 : i32
    %0 = arith.addi %arg1, %c1_i32 : i32
    %c1_i32_0 = arith.constant 1 : i32
    %1 = arith.muli %0, %c1_i32_0 : i32
    %c0_i32 = arith.constant 0 : i32
    %c0_i32_1 = arith.constant 0 : i32
    return %arg0, %1, %c0_i32 : i32, i32, i32
  }
  func.func @transform_2(%arg0: i32, %arg1: i32) -> (i32, i32, i32) {
    %c0_i32 = arith.constant 0 : i32
    %c0_i32_0 = arith.constant 0 : i32
    %c0_i32_1 = arith.constant 0 : i32
    %c0_i32_2 = arith.constant 0 : i32
    return %c0_i32, %c0_i32_0, %c0_i32_1 : i32, i32, i32
  }
  func.func @transform_3(%arg0: i32, %arg1: i32) -> (i32, i32) {
    %c0_i32 = arith.constant 0 : i32
    %c0_i32_0 = arith.constant 0 : i32
    %c0_i32_1 = arith.constant 0 : i32
    return %c0_i32, %c0_i32_0 : i32, i32
  }
  func.func @transform_4(%arg0: i32, %arg1: i32) -> (i32, i32, i32) {
    %c0_i32 = arith.constant 0 : i32
    %c0_i32_0 = arith.constant 0 : i32
    return %arg0, %arg1, %c0_i32 : i32, i32, i32
  }
}

</mosaic_0001>

<llo_original>
// kernel: tpu_custom_call.1
$region0: #{tpu_custom_call.1}
  #allocation0 [shape = 'u32[]', space=smem, size = 0x4, offset = 0x4, fixed_abs, tag = 'smem constant byte address 0x4 - core index']
  #allocation1 [shape = 'u32[72,128]{1,0:T(1,128)}', space=vmem, size = 0x9000, scoped, tag = 'internal scratch']
  %s0 = inlined_call_operand.hbm [shape: bf16[2,16,16], index: 0, kind: input, shape index: {}]
  %s1 = inlined_call_operand.hbm [shape: bf16[2,16,16], index: 1, kind: input, shape index: {}]
  %s2 = inlined_call_operand.hbm [shape: bf16[2,16,32], index: 2, kind: input, shape index: {}]
  %s3 = inlined_call_operand.vmem [shape: f32[1,32], index: 3, kind: input, shape index: {}]
  %s4 = inlined_call_operand.hbm [shape: f32[2,8,32], index: 4, kind: output, shape index: {}]
  %s5 = sld [smem:[#allocation0]]
  $region61: #{tpu_custom_call.1} parent=0
    _
  %s7 = ssub.s32 1, %s5
  %s8 = scalar_select 0, %s7, %s5
  $region1: #{tpu_custom_call.1} parent=0
    #allocation2 [shape = 'u8[4096]{0}', space=vmem, size = 0x1000, scoped, tag = 'input window, operand 0']
    #allocation3 [shape = 's32[2]{0}', space=sflag, size = 0x8, scoped, tag = 'scoped memory for tpu_custom_call.1']
    #allocation4 [shape = 's32[2]{0}', space=sflag, size = 0x8, scoped, tag = 'scoped memory for tpu_custom_call.1']
    #allocation5 [shape = 'u8[4096]{0}', space=vmem, size = 0x1000, scoped, tag = 'input window, operand 1']
    #allocation6 [shape = 's32[2]{0}', space=sflag, size = 0x8, scoped, tag = 'scoped memory for tpu_custom_call.1']
    #allocation7 [shape = 'u8[8192]{0}', space=vmem, size = 0x2000, scoped, tag = 'input window, operand 2, single buffered']
    #allocation8 [shape = 'u8[8192]{0}', space=vmem, size = 0x2000, scoped, tag = 'output window, operand 0']
    %9 = vsyncpa [#allocation3], 0
    %s10 = scalar_lea.sflag [#allocation3], 1
    %11 = vsyncpa %s10, 0
    %12 = vsyncpa [#allocation6], 0
    %s13 = scalar_lea.sflag [#allocation6], 1
    %14 = vsyncpa %s13, 0
    %15 = vsyncpa [#allocation4], 0
    %s16 = scalar_lea.sflag [#allocation4], 1
    %17 = vsyncpa %s16, 0
    loop: start=0, step=1, limit=4
    $region2: #{tpu_custom_call.1} parent=1 // loop_pre_header
      _
    $region3: #{tpu_custom_call.1} parent=1 // loop_header
      %s19 = sphi 0, %s23
      %p20 = scmp.ge.s32.totalorder %s19, 4
      %s26 = sphi 0, %s38
      %s27 = sphi 0, %s34
      %s28 = sphi 0, %s26
      %s29 = sphi 0, %s27
      %s30 = sphi 0, %s28
      %s31 = sphi 0, %s29
      %s43 = sphi 0, %s45
      %s46 = sphi 0, %s43
      %s47 = sphi 0, %s46
      %s63 = sphi 0, %s47
      %s73 = sphi 0, %s75
      %s76 = sphi 0, %s73
      %s77 = sphi 0, %s76
      %s93 = sphi 0, %s77
      %s97 = sphi 0, %s97
      %s99 = sphi 0, %s97
      %s100 = sphi 0, %s99
      %s114 = sphi 0, %s100
      %s118 = sphi 0, %s118
      %s120 = sphi 0, %s118
      %s121 = sphi 0, %s120
      %s135 = sphi 0, %s121
      %s143 = sphi 0, %s145
      %s146 = sphi 0, %s143
      %s147 = sphi 0, %s146
      %s163 = sphi 0, %s147
    $region4: #{tpu_custom_call.1} parent=1 // loop_header_branch
      %22 = sbr.rel (%p20) target = $region8
    $region5: #{tpu_custom_call.1} parent=1 // loop_body
      %s24 = ssub.s32 %s19, 1
      %s25 = ssub.s32 %s19, 2
      %s32 = sadd.s32 1, %s27
      %p33 = scmp.ge.s32.totalorder %s32, 1
      %s34 = scalar_select %p33, 0, %s32
      %s35 = sadd.s32 1, %s26
      %s36 = scalar_select %p33, %s35, %s26
      %p37 = scmp.ge.s32.totalorder %s36, 2
      %s38 = scalar_select %p37, 0, %s36
      %s39 = ssub.s32 %s26, %s38
      %s40 = ssub.s32 %s27, %s34
      %s41 = sor.u32 %s39, %s40
      %p42 = scmp.eq.s32.totalorder %s41, 0
      %s44 = sadd.s32 %s43, 1
      %s45 = scalar_select %p42, %s43, %s44
      %p48 = pneg %p42
      %p49 = scmp.eq.s32.totalorder %s19, 1
      %p50 = por %p48, %p49
      %p51 = scmp.ne.s32.totalorder %s43, %s46
      %p52 = scmp.eq.s32.totalorder %s19, 0
      %p53 = por %p51, %p52
      %p54 = scmp.ne.s32.totalorder %s43, %s46
      %p55 = scmp.eq.s32.totalorder %s24, 1
      %p56 = por %p54, %p55
      %p57 = scmp.ne.s32.totalorder %s46, %s47
      %p58 = scmp.eq.s32.totalorder %s24, 0
      %p59 = por %p57, %p58
      %p60 = scmp.ne.s32.totalorder %s46, %s47
      %p61 = scmp.eq.s32.totalorder %s25, 1
      %p62 = por %p60, %p61
      %p64 = scmp.ne.s32.totalorder %s47, %s63
      %p65 = scmp.eq.s32.totalorder %s25, 0
      %p66 = por %p64, %p65
      %s67 = sadd.s32 %s27, 1
      %s68 = sadd.s32 %s34, 1
      %s69 = ssub.s32 %s26, %s38
      %s70 = ssub.s32 %s67, %s68
      %s71 = sor.u32 %s69, %s70
      %p72 = scmp.eq.s32.totalorder %s71, 0
      %s74 = sadd.s32 %s73, 1
      %s75 = scalar_select %p72, %s73, %s74
      %p78 = pneg %p72
      %p79 = scmp.eq.s32.totalorder %s19, 1
      %p80 = por %p78, %p79
      %p81 = scmp.ne.s32.totalorder %s73, %s76
      %p82 = scmp.eq.s32.totalorder %s19, 0
      %p83 = por %p81, %p82
      %p84 = scmp.ne.s32.totalorder %s73, %s76
      %p85 = scmp.eq.s32.totalorder %s24, 1
      %p86 = por %p84, %p85
      %p87 = scmp.ne.s32.totalorder %s76, %s77
      %p88 = scmp.eq.s32.totalorder %s24, 0
      %p89 = por %p87, %p88
      %p90 = scmp.ne.s32.totalorder %s76, %s77
      %p91 = scmp.eq.s32.totalorder %s25, 1
      %p92 = por %p90, %p91
      %p94 = scmp.ne.s32.totalorder %s77, %s93
      %p95 = scmp.eq.s32.totalorder %s25, 0
      %p96 = por %p94, %p95
      %s98 = sadd.s32 %s97, 1
      %p101 = scmp.eq.s32.totalorder %s19, 1
      %p102 = scmp.ne.s32.totalorder %s97, %s99
      %p103 = scmp.eq.s32.totalorder %s19, 0
      %p104 = por %p102, %p103
      %p105 = scmp.ne.s32.totalorder %s97, %s99
      %p106 = scmp.eq.s32.totalorder %s24, 1
      %p107 = por %p105, %p106
      %p108 = scmp.ne.s32.totalorder %s99, %s100
      %p109 = scmp.eq.s32.totalorder %s24, 0
      %p110 = por %p108, %p109
      %p111 = scmp.ne.s32.totalorder %s99, %s100
      %p112 = scmp.eq.s32.totalorder %s25, 1
      %p113 = por %p111, %p112
      %p115 = scmp.ne.s32.totalorder %s100, %s114
      %p116 = scmp.eq.s32.totalorder %s25, 0
      %p117 = por %p115, %p116
      %s119 = sadd.s32 %s118, 1
      %p122 = scmp.eq.s32.totalorder %s19, 1
      %p123 = scmp.ne.s32.totalorder %s118, %s120
      %p124 = scmp.eq.s32.totalorder %s19, 0
      %p125 = por %p123, %p124
      %p126 = scmp.ne.s32.totalorder %s118, %s120
      %p127 = scmp.eq.s32.totalorder %s24, 1
      %p128 = por %p126, %p127
      %p129 = scmp.ne.s32.totalorder %s120, %s121
      %p130 = scmp.eq.s32.totalorder %s24, 0
      %p131 = por %p129, %p130
      %p132 = scmp.ne.s32.totalorder %s120, %s121
      %p133 = scmp.eq.s32.totalorder %s25, 1
      %p134 = por %p132, %p133
      %p136 = scmp.ne.s32.totalorder %s121, %s135
      %p137 = scmp.eq.s32.totalorder %s25, 0
      %p138 = por %p136, %p137
      %s139 = ssub.s32 %s26, %s38
      %s140 = ssub.s32 %s27, %s34
      %s141 = sor.u32 %s139, %s140
      %p142 = scmp.eq.s32.totalorder %s141, 0
      %s144 = sadd.s32 %s143, 1
      %s145 = scalar_select %p142, %s143, %s144
      %p148 = pneg %p142
      %p149 = scmp.eq.s32.totalorder %s19, 1
      %p150 = por %p148, %p149
      %p151 = scmp.ne.s32.totalorder %s143, %s146
      %p152 = scmp.eq.s32.totalorder %s19, 0
      %p153 = por %p151, %p152
      %p154 = scmp.ne.s32.totalorder %s143, %s146
      %p155 = scmp.eq.s32.totalorder %s24, 1
      %p156 = por %p154, %p155
      %p157 = scmp.ne.s32.totalorder %s146, %s147
      %p158 = scmp.eq.s32.totalorder %s24, 0
      %p159 = por %p157, %p158
      %p160 = scmp.ne.s32.totalorder %s146, %s147
      %p161 = scmp.eq.s32.totalorder %s25, 1
      %p162 = por %p160, %p161
      %p164 = scmp.ne.s32.totalorder %s147, %s163
      %p165 = scmp.eq.s32.totalorder %s25, 0
      %p166 = por %p164, %p165
      %p167 = scmp.le.s32.totalorder 1, %s19
      %p168 = scmp.lt.s32.totalorder %s19, 3
      %p169 = pnand %p167, %p168
      %p170 = pneg %p169
      // Predicated region
      $region9: #{tpu_custom_call.1} parent=5 // pred_check
        _
      $region10: #{tpu_custom_call.1} parent=5 // pred_check_branch
        %172 = sbr.rel (%p169) target = $region12
      $region11: #{tpu_custom_call.1} parent=5 // pred_region
        %s173 = ssub.s32 %s19, 1
        // Predicated region
        $region13: #{tpu_custom_call.1} parent=11 // pred_check
          %p174 = pneg %p110
        $region14: #{tpu_custom_call.1} parent=11 // pred_check_branch
          %176 = sbr.rel (%p174) target = $region16
        $region15: #{tpu_custom_call.1} parent=11 // pred_region
          %178 = vsyncadd [#allocation6], 0
          %s179 = sshll.u32 %s2, 4
          %s180 = int_to_ptr.hbm [resolvable:$true] %s179
          %s181 = sshll.u32 [#allocation7], 4
          %s182 = int_to_ptr.vmem [resolvable:$true] %s181
          %187 = dma.hbm_to_vmem [thread:$0]  %s180, 256, %s182, [#allocation6], 64, 64, 4
        $region16: #{tpu_custom_call.1} parent=11 // pred_fallthru
          _
        // Predicated region
        $region17: #{tpu_custom_call.1} parent=11 // pred_check
          %p188 = pneg %p131
        $region18: #{tpu_custom_call.1} parent=11 // pred_check_branch
          %190 = sbr.rel (%p188) target = $region20
        $region19: #{tpu_custom_call.1} parent=11 // pred_region
          _
        $region20: #{tpu_custom_call.1} parent=11 // pred_fallthru
          _
      $region12: #{tpu_custom_call.1} parent=5 // pred_fallthru
        _
      %p191 = scmp.lt.s32.totalorder %s19, 2
      // Predicated region
      $region21: #{tpu_custom_call.1} parent=5 // pred_check
        %p192 = pneg %p191
      $region22: #{tpu_custom_call.1} parent=5 // pred_check_branch
        %194 = sbr.rel (%p192) target = $region24
      $region23: #{tpu_custom_call.1} parent=5 // pred_region
        // Predicated region
        $region25: #{tpu_custom_call.1} parent=23 // pred_check
          %p195 = pneg %p53
        $region26: #{tpu_custom_call.1} parent=23 // pred_check_branch
          %197 = sbr.rel (%p195) target = $region28
        $region27: #{tpu_custom_call.1} parent=23 // pred_region
          %s198 = sand.u32 %s43, 1
          %s199 = scalar_lea.sflag [#allocation3], %s198
          %s200 = sand.u32 %s43, 1
          %s201 = smul.addr %s200, 4
          %s202 = scalar_lea.vmem [#allocation2], %s201
          %204 = vsyncadd %s199, 0
          %s205 = smul.addr %s26, 2
          %s206 = sadd.s32 %s27, %s205
          %s207 = smul.addr %s206, 4
          %s208 = scalar_lea.hbm %s0, %s207
          %s210 = sshll.u32 %s208, 4
          %s211 = int_to_ptr.hbm [resolvable:$true] %s210
          %s212 = sshll.u32 %s202, 4
          %s213 = int_to_ptr.vmem [resolvable:$true] %s212
          %215 = dma.hbm_to_vmem [thread:$0]  %s211, 64, %s213, %s199
        $region28: #{tpu_custom_call.1} parent=23 // pred_fallthru
          _
        // Predicated region
        $region29: #{tpu_custom_call.1} parent=23 // pred_check
          %p216 = pneg %p83
        $region30: #{tpu_custom_call.1} parent=23 // pred_check_branch
          %218 = sbr.rel (%p216) target = $region32
        $region31: #{tpu_custom_call.1} parent=23 // pred_region
          %s219 = sand.u32 %s19, 1
          %s220 = scalar_lea.sflag [#allocation6], %s219
          %s221 = sand.u32 %s73, 1
          %s222 = smul.addr %s221, 4
          %s223 = scalar_lea.vmem [#allocation5], %s222
          %s224 = sadd.s32 %s27, 1
          %226 = vsyncadd %s220, 0
          %s227 = smul.addr %s26, 2
          %s228 = sadd.s32 %s224, %s227
          %s229 = smul.addr %s228, 4
          %s230 = scalar_lea.hbm %s1, %s229
          %s232 = sshll.u32 %s230, 4
          %s233 = int_to_ptr.hbm [resolvable:$true] %s232
          %s234 = sshll.u32 %s223, 4
          %s235 = int_to_ptr.vmem [resolvable:$true] %s234
          %237 = dma.hbm_to_vmem [thread:$0]  %s233, 64, %s235, %s220
        $region32: #{tpu_custom_call.1} parent=23 // pred_fallthru
          _
      $region24: #{tpu_custom_call.1} parent=5 // pred_fallthru
        _
      %p238 = scmp.le.s32.totalorder 1, %s19
      %p239 = scmp.lt.s32.totalorder %s19, 3
      %p240 = pnand %p238, %p239
      %p241 = pneg %p240
      // Predicated region
      $region33: #{tpu_custom_call.1} parent=5 // pred_check
        _
      $region34: #{tpu_custom_call.1} parent=5 // pred_check_branch
        %243 = sbr.rel (%p240) target = $region36
      $region35: #{tpu_custom_call.1} parent=5 // pred_region
        %s244 = ssub.s32 %s19, 1
        %s245 = sand.u32 %s46, 1
        %s246 = scalar_lea.sflag [#allocation3], %s245
        %s247 = sand.u32 %s46, 1
        %s248 = smul.addr %s247, 4
        %s249 = scalar_lea.vmem [#allocation2], %s248
        // Predicated region
        $region37: #{tpu_custom_call.1} parent=35 // pred_check
          %p250 = pneg %p59
        $region38: #{tpu_custom_call.1} parent=35 // pred_check_branch
          %252 = sbr.rel (%p250) target = $region40
        $region39: #{tpu_custom_call.1} parent=35 // pred_region
          %254 = dma.done %s246, 64
        $region40: #{tpu_custom_call.1} parent=35 // pred_fallthru
          _
        %s255 = sand.u32 %s24, 1
        %s256 = scalar_lea.sflag [#allocation6], %s255
        %s257 = sand.u32 %s76, 1
        %s258 = smul.addr %s257, 4
        %s259 = scalar_lea.vmem [#allocation5], %s258
        // Predicated region
        $region41: #{tpu_custom_call.1} parent=35 // pred_check
          %p260 = pneg %p89
        $region42: #{tpu_custom_call.1} parent=35 // pred_check_branch
          %262 = sbr.rel (%p260) target = $region44
        $region43: #{tpu_custom_call.1} parent=35 // pred_region
          %264 = dma.done %s256, 64
        $region44: #{tpu_custom_call.1} parent=35 // pred_fallthru
          _
        // Predicated region
        $region45: #{tpu_custom_call.1} parent=35 // pred_check
          %p265 = pneg %p110
        $region46: #{tpu_custom_call.1} parent=35 // pred_check_branch
          %267 = sbr.rel (%p265) target = $region48
        $region47: #{tpu_custom_call.1} parent=35 // pred_region
          %269 = dma.done [#allocation6], 256
        $region48: #{tpu_custom_call.1} parent=35 // pred_fallthru
          _
        %s270 = sand.u32 %s46, 1
        %s271 = scalar_lea.sflag [#allocation3], %s270
        %s272 = sand.u32 %s46, 1
        %s273 = smul.addr %s272, 4
        %s274 = scalar_lea.vmem [#allocation2], %s273
        %p275 = pneg %p59
        %p276 = pneg %p56
        %s277 = sand.u32 %s24, 1
        %s278 = scalar_lea.sflag [#allocation6], %s277
        %s279 = sand.u32 %s76, 1
        %s280 = smul.addr %s279, 4
        %s281 = scalar_lea.vmem [#allocation5], %s280
        %p282 = pneg %p89
        %p283 = pneg %p86
        %p284 = pneg %p110
        %p285 = pneg %p107
        %p286 = pneg %p131
        %p287 = pneg %p128
        %p288 = pneg %p159
        %p289 = pneg %p156
        %s290 = sand.u32 %s146, 1
        %s291 = scalar_lea.sflag [#allocation4], %s290
        %s292 = sand.u32 %s146, 1
        %s293 = smul.addr %s292, 8
        %s294 = scalar_lea.vmem [#allocation8], %s293
        %s295 = sadd.s32 %s29, 1
        %v297 = vld [vmem:[%s249] sm:$0xf]
        %v298 = vunpack.c.l.bf16 %v297
        %v299 = vrot.slane %v298, 1
        %v300 = vlaneseq
        %v301 = vshrl.u32 %v300, 7
        %v302 = vld [vmem:[%s259] sm:$0xf]
        %v303 = vunpack.c.l.bf16 %v302
        %v304 = vperm.slane %v303, 0
        %vm305 = vcmp.eq.s32.totalorder %v301, 7
        %v306 = vsel %vm305, %v304, %v299
        %v307 = vpack.c.bf16 %v306, %v306
        %v308 = vld [vmem:[#allocation7] sm:$0xf]
        %v309 = vld [vmem:[#allocation7 + $0x4] sm:$0xf]
        %s310 = scalar_lea.vmem [#allocation7], 8
        %v311 = vld [vmem:[%s310] sm:$0xf]
        %v312 = vld [vmem:[%s310 + $0x4] sm:$0xf]
        %v315 = vunpack.c.l.b16 %v311
        %v316 = vunpack.c.l.b16 %v312
        %v317 = vpack.c.b16 %v316, %v315
        %vm319 = vcmask 130048
        %v321 = vsel %vm319, %v307, 0
        %323 = vmatpush.bf16.msra.mxu0 0
        %324 = vmatpush.bf16.msra.mxu0 0
        %325 = vmatpush.bf16.msra.mxu0 0
        %326 = vmatpush.bf16.msra.mxu0 0
        %327 = vmatpush.bf16.msra.mxu0 0
        %328 = vmatpush.bf16.msra.mxu0 0
        %329 = vmatpush.bf16.msra.mxu0 0
        %330 = vmatpush.bf16.msra.mxu0 %v317
        %331 = vmatmul.bf16.gmra.mxu0 %v321
        %v332 = vpop.f32.mrf.mxu0
        %v333 = vadd.f32 0.0, %v332
        %v334 = vpop.f32.mrf.mxu0
        %335 = vdwg.mxu0
        %v338 = vunpack.c.l.b16 %v308
        %v339 = vunpack.c.l.b16 %v309
        %v340 = vpack.c.b16 %v339, %v338
        %v343 = vsel %vm319, %v297, 0
        %345 = vmatpush.bf16.msra.mxu0 0
        %346 = vmatpush.bf16.msra.mxu0 0
        %347 = vmatpush.bf16.msra.mxu0 0
        %348 = vmatpush.bf16.msra.mxu0 0
        %349 = vmatpush.bf16.msra.mxu0 0
        %350 = vmatpush.bf16.msra.mxu0 0
        %351 = vmatpush.bf16.msra.mxu0 0
        %352 = vmatpush.bf16.msra.mxu0 %v340
        %353 = vmatmul.bf16.gmra.mxu0 %v343
        %v354 = vpop.f32.mrf.mxu0
        %v355 = vadd.f32 %v333, %v354
        %v356 = vpop.f32.mrf.mxu0
        %357 = vdwg.mxu0
        %v358 = vld [vmem:[%s3] sm:$0x1]
        %v360 = vperm.slane %v358, 0
        %v362 = vadd.f32 %v355, %v360
        %vm363 = vcmask 261120
        %364 = vst.msk [vmem:[%s294] sm:$0xff] %vm363, %v362
        %s365 = sand.u32 %s146, 1
        %s366 = scalar_lea.sflag [#allocation4], %s365
        %s367 = sand.u32 %s146, 1
        %s368 = smul.addr %s367, 8
        %s369 = scalar_lea.vmem [#allocation8], %s368
        // Predicated region
        $region49: #{tpu_custom_call.1} parent=35 // pred_check
          %p370 = pneg %p156
        $region50: #{tpu_custom_call.1} parent=35 // pred_check_branch
          %372 = sbr.rel (%p370) target = $region52
        $region51: #{tpu_custom_call.1} parent=35 // pred_region
          %374 = vsyncadd %s366, 0
          %s375 = sadd.s32 %s29, %s28
          %s376 = smul.addr %s375, 8
          %s377 = scalar_lea.hbm %s4, %s376
          %s379 = sshll.u32 %s369, 4
          %s380 = int_to_ptr.vmem [resolvable:$true] %s379
          %s381 = sshll.u32 %s377, 4
          %s382 = int_to_ptr.hbm [resolvable:$true] %s381
          %384 = dma.vmem_to_hbm [thread:$0]  %s380, 128, %s382, %s366
        $region52: #{tpu_custom_call.1} parent=35 // pred_fallthru
          _
      $region36: #{tpu_custom_call.1} parent=5 // pred_fallthru
        _
      %p385 = scmp.le.s32.totalorder 2, %s19
      // Predicated region
      $region53: #{tpu_custom_call.1} parent=5 // pred_check
        %p386 = pneg %p385
      $region54: #{tpu_custom_call.1} parent=5 // pred_check_branch
        %388 = sbr.rel (%p386) target = $region56
      $region55: #{tpu_custom_call.1} parent=5 // pred_region
        %s389 = ssub.s32 %s19, 2
        // Predicated region
        $region57: #{tpu_custom_call.1} parent=55 // pred_check
          %p390 = pneg %p162
        $region58: #{tpu_custom_call.1} parent=55 // pred_check_branch
          %392 = sbr.rel (%p390) target = $region60
        $region59: #{tpu_custom_call.1} parent=55 // pred_region
          %s393 = sand.u32 %s147, 1
          %s394 = scalar_lea.sflag [#allocation4], %s393
          %s395 = sand.u32 %s147, 1
          %s396 = smul.addr %s395, 8
          %s397 = scalar_lea.vmem [#allocation8], %s396
          %399 = dma.done %s394, 128
        $region60: #{tpu_custom_call.1} parent=55 // pred_fallthru
          _
      $region56: #{tpu_custom_call.1} parent=5 // pred_fallthru
        _
    $region6: #{tpu_custom_call.1} parent=1 // loop_footer
      %s23 = sadd.s32 1, %s19
    $region7: #{tpu_custom_call.1} parent=1 // loop_footer_branch
      %18 = sbr.rel target = $region3
    $region8: #{tpu_custom_call.1} parent=1 // loop_exit
      _
    %400 = vsyncpa [#allocation3], 1
    %s401 = scalar_lea.sflag [#allocation3], 1
    %402 = vsyncpa %s401, 1
    %403 = vsyncpa [#allocation6], 1
    %s404 = scalar_lea.sflag [#allocation6], 1
    %405 = vsyncpa %s404, 1
    %406 = vsyncpa [#allocation4], 1
    %s407 = scalar_lea.sflag [#allocation4], 1
    %408 = vsyncpa %s407, 1

</llo_original>
